<compile_context>
chip_gen: v7x
topology: tpu7x:2x2x1
jax: 0.10.0
libtpu: 0.0.40
codegen_flags: <defaults>
</compile_context>

<pallas_src>
import math

import jax
import jax.numpy as jnp
from jax.experimental import pallas as pl
from jax.experimental.pallas import tpu as pltpu  # noqa: F401  (TPU backend import)

# ----------------------------- configuration ------------------------------
BATCH   = 2
D_MODEL = 16     # hidden_dim (channel dim D of x)
V3      = 3      # vector-neuron spatial dimension (always 3)
L_SEQ   = 8      # length_dim L


# --------------------------------- kernel ----------------------------------
def vn_attn_kernel(x_ref, w1t_ref, w2t_ref, w3_ref, out_ref):
    """Single invocation (no grid).  Shapes:
         x_ref   : (G, L, D)  with G = B*3   (channels D on the lane axis)
         w1t_ref : (D, D)  = fc1.weight.T
         w2t_ref : (D, D)  = fc2.weight.T
         w3_ref  : (L, 1)  = fc3.weight.T   (fc3 = nn.Linear(L, 1, bias=False))
         out_ref : (G, D)
    """
    f32 = jnp.float32
    G, L, D = x_ref.shape

    x3 = x_ref[...]                                   # (G, L, D)
    x2 = x3.reshape(G * L, D)                         # layout-free merge -> sublanes

    # fc1 / fc2 (VNLinear over the channel dim): one stacked MXU matmul each.
    ht = jnp.dot(x2, w1t_ref[...], preferred_element_type=f32).reshape(G, L, D)
    hs = jnp.dot(x2, w2t_ref[...], preferred_element_type=f32).reshape(G, L, D)

    # fc3 applied to score, reassociated so score (B,L,3,L) is never built:
    #   ait[g,l] = sum_i w3[i] * sum_d ht[g,l,d]*hs[g,i,d]
    #            = sum_d ht[g,l,d] * hsw[g,d],  hsw[g,d] = sum_i w3[i]*hs[g,i,d]
    w3c = w3_ref[...].reshape(1, L, 1)                            # (1, L, 1)
    hsw = jnp.sum(hs * w3c, axis=1, keepdims=True)                # (G, 1, D)
    ait = jnp.sum(ht * hsw, axis=2, keepdims=True)                # (G, L, 1)

    # softmax over the length axis L (PyTorch dim=3), numerically stabilized.
    m = jnp.max(ait, axis=1, keepdims=True)                       # (G, 1, 1)
    e = jnp.exp(ait - m)
    s = jnp.sum(e, axis=1, keepdims=True)                         # (G, 1, 1)
    attn = e * pl.reciprocal(s, approx=True)                      # EUP reciprocal

    # context pooling: out[g,d] = sum_l attn[g,l] * x[g,l,d]
    out_ref[...] = jnp.sum(attn * x3, axis=1)                     # (G, D)


# -------------------------------- wrapper -----------------------------------
@jax.jit
def vn_attention_with_context2(x, w1, w2, w3):
    """x: PyTorch layout (B, D, 3, L).  Returns (B, D, 3) like the module."""
    B, D, V, L = x.shape
    # One-time layout conversion: channels onto the lane axis, (batch, vec-3)
    # stacked on the sublane axis.  In a full model this would be hoisted to
    # the model boundary instead of being paid per layer.
    x3 = jnp.transpose(x, (0, 2, 3, 1)).reshape(B * V, L, D).astype(jnp.float32)

    out = pl.pallas_call(
        vn_attn_kernel,
        out_shape=jax.ShapeDtypeStruct((B * V, D), jnp.float32),
    )(x3,
      w1.T.astype(jnp.float32),          # (D, D)
      w2.T.astype(jnp.float32),          # (D, D)
      w3.T.astype(jnp.float32))          # (L, 1)

    return jnp.transpose(out.reshape(B, V, D), (0, 2, 1))         # (B, D, 3)


# ----------------------- deterministic parameter init ----------------------
def init_params(key, d_model, length):
    k1, k2, k3 = jax.random.split(key, 3)

    def lin(k, out_f, in_f):                       # nn.Linear default init
        bound = 1.0 / math.sqrt(in_f)
        return jax.random.uniform(k, (out_f, in_f), jnp.float32, -bound, bound)

    return dict(w1=lin(k1, d_model, d_model),      # fc1.weight  (D, D)
                w2=lin(k2, d_model, d_model),      # fc2.weight  (D, D)
                w3=lin(k3, 1, length))             # fc3.weight  (1, L)


# --------------------------- pure-JAX reference ----------------------------
def reference(x, w1, w2, w3):
    """Literal mirror of the PyTorch forward, x in PyTorch layout (B, D, 3, L)."""
    hi = jax.lax.Precision.HIGHEST
    ht = jnp.einsum('oc,bcvl->bovl', w1, x, precision=hi)          # fc1
    hs = jnp.einsum('oc,bcvl->bovl', w2, x, precision=hi)          # fc2
    score = jnp.einsum('bdvl,bdvi->bivl', ht, hs, precision=hi)    # (B, L, 3, L)
    ait = jnp.einsum('oi,bivl->bovl', w3, score, precision=hi)     # fc3 -> (B,1,3,L)
    attn = jax.nn.softmax(ait, axis=3)
    out = jnp.einsum('bsvl,bdvl->bsdv', attn, x, precision=hi)     # (B,1,D,3)
    return out[:, 0, :, :]                                         # (B, D, 3)


if __name__ == "__main__":
    key = jax.random.PRNGKey(0)
    kx, kp = jax.random.split(key)

    # PyTorch layout: (B, hidden_dim, 3, length_dim)
    x = jax.random.normal(kx, (BATCH, D_MODEL, V3, L_SEQ), jnp.float32)
    p = init_params(kp, D_MODEL, L_SEQ)

    out = vn_attention_with_context2(x, p["w1"], p["w2"], p["w3"])
    jax.block_until_ready(out)

    ref = reference(x, p["w1"], p["w2"], p["w3"])
    err = float(jnp.max(jnp.abs(out - ref)))
    assert out.shape == (BATCH, D_MODEL, V3), out.shape
    # Tolerance sized for the EUP approximate reciprocal in the softmax
    # normalization plus f32 reassociation noise; structural bugs give O(1) error.
    assert err < 2e-2, f"max abs error vs reference: {err}"
    print("KERNEL_OK")
</pallas_src>

<mosaic_0001>
module attributes {stable_mosaic.version = 11 : i64} {
  func.func @vn_attn_kernel(%arg0: memref<6x8x16xf32, #tpu.memory_space<vmem>>, %arg1: memref<16x16xf32, #tpu.memory_space<vmem>>, %arg2: memref<16x16xf32, #tpu.memory_space<vmem>>, %arg3: memref<8x1xf32, #tpu.memory_space<vmem>>, %arg4: memref<6x16xf32, #tpu.memory_space<vmem>>) attributes {dimension_semantics = [], scalar_prefetch = 0 : i64, scratch_operands = 0 : i64, tpu.core_type = #tpu.core_type<tc>} {
    %c0 = arith.constant 0 : index
    %c0_0 = arith.constant 0 : index
    %c0_1 = arith.constant 0 : index
    %0 = vector.load %arg0[%c0, %c0_0, %c0_1] : memref<6x8x16xf32, #tpu.memory_space<vmem>>, vector<6x8x16xf32>
    %1 = vector.shape_cast %0 : vector<6x8x16xf32> to vector<48x16xf32>
    %c0_2 = arith.constant 0 : index
    %c0_3 = arith.constant 0 : index
    %2 = vector.load %arg1[%c0_2, %c0_3] : memref<16x16xf32, #tpu.memory_space<vmem>>, vector<16x16xf32>
    %cst = arith.constant dense<0.000000e+00> : vector<48x16xf32>
    %3 = tpu.matmul %1, %2, %cst {dimension_numbers = #tpu.dot_dimension_numbers<[1], [0], [0], [1], [0, 0, 1, 1], [], []>} : vector<48x16xf32>, vector<16x16xf32>, vector<48x16xf32> -> vector<48x16xf32>
    %4 = vector.shape_cast %3 : vector<48x16xf32> to vector<6x8x16xf32>
    %c0_4 = arith.constant 0 : index
    %c0_5 = arith.constant 0 : index
    %5 = vector.load %arg2[%c0_4, %c0_5] : memref<16x16xf32, #tpu.memory_space<vmem>>, vector<16x16xf32>
    %cst_6 = arith.constant dense<0.000000e+00> : vector<48x16xf32>
    %6 = tpu.matmul %1, %5, %cst_6 {dimension_numbers = #tpu.dot_dimension_numbers<[1], [0], [0], [1], [0, 0, 1, 1], [], []>} : vector<48x16xf32>, vector<16x16xf32>, vector<48x16xf32> -> vector<48x16xf32>
    %7 = vector.shape_cast %6 : vector<48x16xf32> to vector<6x8x16xf32>
    %c0_7 = arith.constant 0 : index
    %c0_8 = arith.constant 0 : index
    %8 = vector.load %arg3[%c0_7, %c0_8] : memref<8x1xf32, #tpu.memory_space<vmem>>, vector<8x1xf32>
    %9 = vector.shape_cast %8 : vector<8x1xf32> to vector<1x8x1xf32>
    %10 = vector.broadcast %9 : vector<1x8x1xf32> to vector<6x8x16xf32>
    %11 = arith.mulf %7, %10 : vector<6x8x16xf32>
    %cst_9 = arith.constant dense<0.000000e+00> : vector<6x16xf32>
    %12 = vector.multi_reduction <add>, %11, %cst_9 [1] : vector<6x8x16xf32> to vector<6x16xf32>
    %13 = vector.shape_cast %12 : vector<6x16xf32> to vector<6x1x16xf32>
    %14 = vector.broadcast %13 : vector<6x1x16xf32> to vector<6x8x16xf32>
    %15 = arith.mulf %4, %14 : vector<6x8x16xf32>
    %cst_10 = arith.constant dense<0.000000e+00> : vector<6x8xf32>
    %16 = vector.multi_reduction <add>, %15, %cst_10 [2] : vector<6x8x16xf32> to vector<6x8xf32>
    %17 = vector.shape_cast %16 : vector<6x8xf32> to vector<6x8x1xf32>
    %cst_11 = arith.constant dense<0xFF800000> : vector<6x1xf32>
    %18 = vector.multi_reduction <maximumf>, %17, %cst_11 [1] : vector<6x8x1xf32> to vector<6x1xf32>
    %19 = vector.shape_cast %18 : vector<6x1xf32> to vector<6x1x1xf32>
    %20 = vector.broadcast %19 : vector<6x1x1xf32> to vector<6x8x1xf32>
    %21 = arith.subf %17, %20 : vector<6x8x1xf32>
    %22 = math.exp %21 : vector<6x8x1xf32>
    %cst_12 = arith.constant dense<0.000000e+00> : vector<6x1xf32>
    %23 = vector.multi_reduction <add>, %22, %cst_12 [1] : vector<6x8x1xf32> to vector<6x1xf32>
    %24 = vector.shape_cast %23 : vector<6x1xf32> to vector<6x1x1xf32>
    %25 = tpu.reciprocal %24 {approx = true} : vector<6x1x1xf32> -> vector<6x1x1xf32>
    %26 = vector.broadcast %25 : vector<6x1x1xf32> to vector<6x8x1xf32>
    %27 = arith.mulf %22, %26 : vector<6x8x1xf32>
    %28 = vector.broadcast %27 : vector<6x8x1xf32> to vector<6x8x16xf32>
    %29 = arith.mulf %28, %0 : vector<6x8x16xf32>
    %cst_13 = arith.constant dense<0.000000e+00> : vector<6x16xf32>
    %30 = vector.multi_reduction <add>, %29, %cst_13 [1] : vector<6x8x16xf32> to vector<6x16xf32>
    %c0_14 = arith.constant 0 : index
    %c0_15 = arith.constant 0 : index
    %31 = vector.load %arg4[%c0_14, %c0_15] : memref<6x16xf32, #tpu.memory_space<vmem>>, vector<6x16xf32>
    tpu.vector_store %arg4[%c0_14, %c0_15], %30 {strides = array<i32>} : memref<6x16xf32, #tpu.memory_space<vmem>>, vector<6x16xf32>,
    return
  }
}

</mosaic_0001>

<llo_original>
// kernel: vn_attention_with_context2.1
$region0: #{vn_attention_with_context2.1}
  #allocation0 [shape = 'u32[]', space=smem, size = 0x4, offset = 0x4, fixed_abs, tag = 'smem constant byte address 0x4 - core index']
  #allocation1 [shape = 'u32[144,128]{1,0:T(1,128)}', space=vmem, size = 0x12000, scoped, tag = 'internal scratch']
  %s0 = inlined_call_operand.vmem [shape: f32[6,8,16], index: 0, kind: input, shape index: {}]
  %s1 = inlined_call_operand.vmem [shape: f32[16,16], index: 1, kind: input, shape index: {}]
  %s2 = inlined_call_operand.vmem [shape: f32[16,16], index: 2, kind: input, shape index: {}]
  %s3 = inlined_call_operand.vmem [shape: f32[8,1], index: 3, kind: input, shape index: {}]
  %s4 = inlined_call_operand.vmem [shape: f32[6,16], index: 4, kind: output, shape index: {}]
  %s5 = sld [smem:[#allocation0]]
  $region26: #{vn_attention_with_context2.1} parent=0
    _
  %s7 = ssub.s32 1, %s5
  %s8 = scalar_select 0, %s7, %s5
  // Predicated region
  $region2: #{vn_attention_with_context2.1} parent=0 // pred_check
    _
  $region3: #{vn_attention_with_context2.1} parent=0 // pred_check_branch
    %10 = sbr.rel (0) target = $region5
  $region4: #{vn_attention_with_context2.1} parent=0 // pred_region
    _
  $region5: #{vn_attention_with_context2.1} parent=0 // pred_fallthru
    _
  // Predicated region
  $region6: #{vn_attention_with_context2.1} parent=0 // pred_check
    _
  $region7: #{vn_attention_with_context2.1} parent=0 // pred_check_branch
    %12 = sbr.rel (0) target = $region9
  $region8: #{vn_attention_with_context2.1} parent=0 // pred_region
    _
  $region9: #{vn_attention_with_context2.1} parent=0 // pred_fallthru
    _
  // Predicated region
  $region10: #{vn_attention_with_context2.1} parent=0 // pred_check
    _
  $region11: #{vn_attention_with_context2.1} parent=0 // pred_check_branch
    %14 = sbr.rel (0) target = $region13
  $region12: #{vn_attention_with_context2.1} parent=0 // pred_region
    _
  $region13: #{vn_attention_with_context2.1} parent=0 // pred_fallthru
    _
  // Predicated region
  $region14: #{vn_attention_with_context2.1} parent=0 // pred_check
    _
  $region15: #{vn_attention_with_context2.1} parent=0 // pred_check_branch
    %16 = sbr.rel (0) target = $region17
  $region16: #{vn_attention_with_context2.1} parent=0 // pred_region
    _
  $region17: #{vn_attention_with_context2.1} parent=0 // pred_fallthru
    _
  %v17 = vld [vmem:[%s0] sm:$0xff]
  %v18 = vld [vmem:[%s0 + $0x8] sm:$0xff]
  %v19 = vld [vmem:[%s0 + $0x10] sm:$0xff]
  %v20 = vld [vmem:[%s0 + $0x18] sm:$0xff]
  %v21 = vld [vmem:[%s0 + $0x20] sm:$0xff]
  %v22 = vld [vmem:[%s0 + $0x28] sm:$0xff]
  %v23 = vld [vmem:[%s1] sm:$0xff]
  %v24 = vld [vmem:[%s1 + $0x8] sm:$0xff]
  %vm25 = vcmask 130048
  %v27 = vsel %vm25, %v17, 0
  %v30 = vsel %vm25, %v18, 0
  %v33 = vsel %vm25, %v19, 0
  %v36 = vsel %vm25, %v20, 0
  %v39 = vsel %vm25, %v21, 0
  %v42 = vsel %vm25, %v22, 0
  %44 = vmatprep.subr.mxu0 0.0
  %45 = vmatpush1.msra.mxu0 %v23
  %46 = vmatprep.subr.mxu0 0.0
  %47 = vmatpush1.msra.mxu0 %v24
  %48 = vmatprep.subr.mxu0 0.0
  %49 = vmatpush1.msra.mxu0 0.0
  %50 = vmatprep.subr.mxu0 0.0
  %51 = vmatpush1.msra.mxu0 0.0
  %52 = vmatprep.subr.mxu0 0.0
  %53 = vmatpush1.msra.mxu0 0.0
  %54 = vmatprep.subr.mxu0 0.0
  %55 = vmatpush1.msra.mxu0 0.0
  %56 = vmatprep.subr.mxu0 0.0
  %57 = vmatpush1.msra.mxu0 0.0
  %58 = vmatprep.subr.mxu0 0.0
  %59 = vmatpush1.msra.mxu0 0.0
  %60 = vmatprep.subr.mxu0 0.0
  %61 = vmatpush1.msra.mxu0 0.0
  %62 = vmatprep.subr.mxu0 0.0
  %63 = vmatpush1.msra.mxu0 0.0
  %64 = vmatprep.subr.mxu0 0.0
  %65 = vmatpush1.msra.mxu0 0.0
  %66 = vmatprep.subr.mxu0 0.0
  %67 = vmatpush1.msra.mxu0 0.0
  %68 = vmatprep.subr.mxu0 0.0
  %69 = vmatpush1.msra.mxu0 0.0
  %70 = vmatprep.subr.mxu0 0.0
  %71 = vmatpush1.msra.mxu0 0.0
  %72 = vmatprep.subr.mxu0 0.0
  %73 = vmatpush1.msra.mxu0 0.0
  %74 = vmatprep.subr.mxu0 0.0
  %75 = vmatpush1.msra.mxu0 0.0
  %76 = vmatprep.subr.mxu0 0.0
  %77 = vmatpush1.msra.mxu0 0.0
  %78 = vmatprep.subr.mxu0 0.0
  %79 = vmatpush1.msra.mxu0 0.0
  %80 = vmatprep.subr.mxu0 0.0
  %81 = vmatpush1.msra.mxu0 0.0
  %82 = vmatprep.subr.mxu0 0.0
  %83 = vmatpush1.msra.mxu0 0.0
  %84 = vmatprep.subr.mxu0 0.0
  %85 = vmatpush1.msra.mxu0 0.0
  %86 = vmatprep.subr.mxu0 0.0
  %87 = vmatpush1.msra.mxu0 0.0
  %88 = vmatprep.subr.mxu0 0.0
  %89 = vmatpush1.msra.mxu0 0.0
  %90 = vmatprep.subr.mxu0 0.0
  %91 = vmatpush1.msra.mxu0 0.0
  %92 = vmatprep.subr.mxu0 0.0
  %93 = vmatpush1.msra.mxu0 0.0
  %94 = vmatprep.subr.mxu0 0.0
  %95 = vmatpush1.msra.mxu0 0.0
  %96 = vmatprep.subr.mxu0 0.0
  %97 = vmatpush1.msra.mxu0 0.0
  %98 = vmatprep.subr.mxu0 0.0
  %99 = vmatpush1.msra.mxu0 0.0
  %100 = vmatprep.subr.mxu0 0.0
  %101 = vmatpush1.msra.mxu0 0.0
  %102 = vmatprep.subr.mxu0 0.0
  %103 = vmatpush1.msra.mxu0 0.0
  %104 = vmatprep.subr.mxu0 0.0
  %105 = vmatpush1.msra.mxu0 0.0
  %106 = vmatprep.subr.mxu0 0.0
  %107 = vmatpush1.msra.mxu0 0.0
  %108 = vmatprep.mubr.f32.mxu0 0.0
  %109 = vmatmul.mubr.f32.gmra.mrb[0].mxu0 %v27
  %v110 = vpop.f32.mrb[0].mxu0
  %v111 = vadd.f32 0.0, %v110
  %v112 = vpop.f32.mrb[0].mxu0
  %113 = vmatprep.mubr.f32.mxu0 0.0
  %114 = vmatmul.mubr.f32.gmra.mrb[0].mxu0 %v30
  %v115 = vpop.f32.mrb[0].mxu0
  %v116 = vadd.f32 0.0, %v115
  %v117 = vpop.f32.mrb[0].mxu0
  %118 = vmatprep.mubr.f32.mxu0 0.0
  %119 = vmatmul.mubr.f32.gmra.mrb[0].mxu0 %v33
  %v120 = vpop.f32.mrb[0].mxu0
  %v121 = vadd.f32 0.0, %v120
  %v122 = vpop.f32.mrb[0].mxu0
  %123 = vmatprep.mubr.f32.mxu0 0.0
  %124 = vmatmul.mubr.f32.gmra.mrb[0].mxu0 %v36
  %v125 = vpop.f32.mrb[0].mxu0
  %v126 = vadd.f32 0.0, %v125
  %v127 = vpop.f32.mrb[0].mxu0
  %128 = vmatprep.mubr.f32.mxu0 0.0
  %129 = vmatmul.mubr.f32.gmra.mrb[0].mxu0 %v39
  %v130 = vpop.f32.mrb[0].mxu0
  %v131 = vadd.f32 0.0, %v130
  %v132 = vpop.f32.mrb[0].mxu0
  %133 = vmatprep.mubr.f32.mxu0 0.0
  %134 = vmatmul.mubr.f32.gmra.mrb[0].mxu0 %v42
  %v135 = vpop.f32.mrb[0].mxu0
  %v136 = vadd.f32 0.0, %v135
  %v137 = vpop.f32.mrb[0].mxu0
  %138 = vdwg.mxu0
  %v139 = vld [vmem:[%s2] sm:$0xff]
  %v140 = vld [vmem:[%s2 + $0x8] sm:$0xff]
  %141 = vmatprep.subr.mxu0 0.0
  %142 = vmatpush1.msra.mxu0 %v139
  %143 = vmatprep.subr.mxu0 0.0
  %144 = vmatpush1.msra.mxu0 %v140
  %145 = vmatprep.subr.mxu0 0.0
  %146 = vmatpush1.msra.mxu0 0.0
  %147 = vmatprep.subr.mxu0 0.0
  %148 = vmatpush1.msra.mxu0 0.0
  %149 = vmatprep.subr.mxu0 0.0
  %150 = vmatpush1.msra.mxu0 0.0
  %151 = vmatprep.subr.mxu0 0.0
  %152 = vmatpush1.msra.mxu0 0.0
  %153 = vmatprep.subr.mxu0 0.0
  %154 = vmatpush1.msra.mxu0 0.0
  %155 = vmatprep.subr.mxu0 0.0
  %156 = vmatpush1.msra.mxu0 0.0
  %157 = vmatprep.subr.mxu0 0.0
  %158 = vmatpush1.msra.mxu0 0.0
  %159 = vmatprep.subr.mxu0 0.0
  %160 = vmatpush1.msra.mxu0 0.0
  %161 = vmatprep.subr.mxu0 0.0
  %162 = vmatpush1.msra.mxu0 0.0
  %163 = vmatprep.subr.mxu0 0.0
  %164 = vmatpush1.msra.mxu0 0.0
  %165 = vmatprep.subr.mxu0 0.0
  %166 = vmatpush1.msra.mxu0 0.0
  %167 = vmatprep.subr.mxu0 0.0
  %168 = vmatpush1.msra.mxu0 0.0
  %169 = vmatprep.subr.mxu0 0.0
  %170 = vmatpush1.msra.mxu0 0.0
  %171 = vmatprep.subr.mxu0 0.0
  %172 = vmatpush1.msra.mxu0 0.0
  %173 = vmatprep.subr.mxu0 0.0
  %174 = vmatpush1.msra.mxu0 0.0
  %175 = vmatprep.subr.mxu0 0.0
  %176 = vmatpush1.msra.mxu0 0.0
  %177 = vmatprep.subr.mxu0 0.0
  %178 = vmatpush1.msra.mxu0 0.0
  %179 = vmatprep.subr.mxu0 0.0
  %180 = vmatpush1.msra.mxu0 0.0
  %181 = vmatprep.subr.mxu0 0.0
  %182 = vmatpush1.msra.mxu0 0.0
  %183 = vmatprep.subr.mxu0 0.0
  %184 = vmatpush1.msra.mxu0 0.0
  %185 = vmatprep.subr.mxu0 0.0
  %186 = vmatpush1.msra.mxu0 0.0
  %187 = vmatprep.subr.mxu0 0.0
  %188 = vmatpush1.msra.mxu0 0.0
  %189 = vmatprep.subr.mxu0 0.0
  %190 = vmatpush1.msra.mxu0 0.0
  %191 = vmatprep.subr.mxu0 0.0
  %192 = vmatpush1.msra.mxu0 0.0
  %193 = vmatprep.subr.mxu0 0.0
  %194 = vmatpush1.msra.mxu0 0.0
  %195 = vmatprep.subr.mxu0 0.0
  %196 = vmatpush1.msra.mxu0 0.0
  %197 = vmatprep.subr.mxu0 0.0
  %198 = vmatpush1.msra.mxu0 0.0
  %199 = vmatprep.subr.mxu0 0.0
  %200 = vmatpush1.msra.mxu0 0.0
  %201 = vmatprep.subr.mxu0 0.0
  %202 = vmatpush1.msra.mxu0 0.0
  %203 = vmatprep.subr.mxu0 0.0
  %204 = vmatpush1.msra.mxu0 0.0
  %205 = vmatprep.mubr.f32.mxu0 0.0
  %206 = vmatmul.mubr.f32.gmra.mrb[0].mxu0 %v27
  %v207 = vpop.f32.mrb[0].mxu0
  %v208 = vadd.f32 0.0, %v207
  %v209 = vpop.f32.mrb[0].mxu0
  %210 = vmatprep.mubr.f32.mxu0 0.0
  %211 = vmatmul.mubr.f32.gmra.mrb[0].mxu0 %v30
  %v212 = vpop.f32.mrb[0].mxu0
  %v213 = vadd.f32 0.0, %v212
  %v214 = vpop.f32.mrb[0].mxu0
  %215 = vmatprep.mubr.f32.mxu0 0.0
  %216 = vmatmul.mubr.f32.gmra.mrb[0].mxu0 %v33
  %v217 = vpop.f32.mrb[0].mxu0
  %v218 = vadd.f32 0.0, %v217
  %v219 = vpop.f32.mrb[0].mxu0
  %220 = vmatprep.mubr.f32.mxu0 0.0
  %221 = vmatmul.mubr.f32.gmra.mrb[0].mxu0 %v36
  %v222 = vpop.f32.mrb[0].mxu0
  %v223 = vadd.f32 0.0, %v222
  %v224 = vpop.f32.mrb[0].mxu0
  %225 = vmatprep.mubr.f32.mxu0 0.0
  %226 = vmatmul.mubr.f32.gmra.mrb[0].mxu0 %v39
  %v227 = vpop.f32.mrb[0].mxu0
  %v228 = vadd.f32 0.0, %v227
  %v229 = vpop.f32.mrb[0].mxu0
  %230 = vmatprep.mubr.f32.mxu0 0.0
  %231 = vmatmul.mubr.f32.gmra.mrb[0].mxu0 %v42
  %v232 = vpop.f32.mrb[0].mxu0
  %v233 = vadd.f32 0.0, %v232
  %v234 = vpop.f32.mrb[0].mxu0
  %235 = vdwg.mxu0
  %v236 = vld [vmem:[%s3] sm:$0xff]
  %238 = vset.pattern.permute.xlu0 0
  %239 = vperm.xlu0 %238, %v236
  %v240 = vpop.permute.xlu0 %239
  %v242 = vmul.f32 %v208, %v240
  %v243 = vmul.f32 %v213, %v240
  %v244 = vmul.f32 %v218, %v240
  %v245 = vmul.f32 %v223, %v240
  %v246 = vmul.f32 %v228, %v240
  %v247 = vmul.f32 %v233, %v240
  %v248 = vsel %vm25, %v242, 0.0
  %v249 = vrot.slane %v248, 4
  %v250 = vadd.f32 %v248, %v249
  %v251 = vrot.slane %v250, 2
  %v252 = vadd.f32 %v250, %v251
  %v253 = vrot.slane %v252, 1
  %v254 = vadd.f32 %v252, %v253
  %v255 = vsel %vm25, %v243, 0.0
  %v256 = vrot.slane %v255, 4
  %v257 = vadd.f32 %v255, %v256
  %v258 = vrot.slane %v257, 2
  %v259 = vadd.f32 %v257, %v258
  %v260 = vrot.slane %v259, 1
  %v261 = vadd.f32 %v259, %v260
  %v262 = vsel %vm25, %v244, 0.0
  %v263 = vrot.slane %v262, 4
  %v264 = vadd.f32 %v262, %v263
  %v265 = vrot.slane %v264, 2
  %v266 = vadd.f32 %v264, %v265
  %v267 = vrot.slane %v266, 1
  %v268 = vadd.f32 %v266, %v267
  %v269 = vsel %vm25, %v245, 0.0
  %v270 = vrot.slane %v269, 4
  %v271 = vadd.f32 %v269, %v270
  %v272 = vrot.slane %v271, 2
  %v273 = vadd.f32 %v271, %v272
  %v274 = vrot.slane %v273, 1
  %v275 = vadd.f32 %v273, %v274
  %v276 = vsel %vm25, %v246, 0.0
  %v277 = vrot.slane %v276, 4
  %v278 = vadd.f32 %v276, %v277
  %v279 = vrot.slane %v278, 2
  %v280 = vadd.f32 %v278, %v279
  %v281 = vrot.slane %v280, 1
  %v282 = vadd.f32 %v280, %v281
  %v283 = vsel %vm25, %v247, 0.0
  %v284 = vrot.slane %v283, 4
  %v285 = vadd.f32 %v283, %v284
  %v286 = vrot.slane %v285, 2
  %v287 = vadd.f32 %v285, %v286
  %v288 = vrot.slane %v287, 1
  %v289 = vadd.f32 %v287, %v288
  %v290 = vmul.f32 %v111, %v254
  %v291 = vmul.f32 %v116, %v261
  %v292 = vmul.f32 %v121, %v268
  %v293 = vmul.f32 %v126, %v275
  %v294 = vmul.f32 %v131, %v282
  %v295 = vmul.f32 %v136, %v289
  %v296 = vsel %vm25, %v290, 0.0
  %297 = vadd.xlane.f32.xlu0 %v296
  %v298 = vpop.xlane.xlu0 %297
  %v299 = vsel %vm25, %v291, 0.0
  %300 = vadd.xlane.f32.xlu0 %v299
  %v301 = vpop.xlane.xlu0 %300
  %v302 = vsel %vm25, %v292, 0.0
  %303 = vadd.xlane.f32.xlu0 %v302
  %v304 = vpop.xlane.xlu0 %303
  %v305 = vsel %vm25, %v293, 0.0
  %306 = vadd.xlane.f32.xlu0 %v305
  %v307 = vpop.xlane.xlu0 %306
  %v308 = vsel %vm25, %v294, 0.0
  %309 = vadd.xlane.f32.xlu0 %v308
  %v310 = vpop.xlane.xlu0 %309
  %v311 = vsel %vm25, %v295, 0.0
  %312 = vadd.xlane.f32.xlu0 %v311
  %v313 = vpop.xlane.xlu0 %312
  %v314 = vrot.slane %v298, 4
  %v315 = vmax.f32 %v298, %v314
  %v316 = vrot.slane %v315, 2
  %v317 = vmax.f32 %v315, %v316
  %v318 = vrot.slane %v317, 1
  %v319 = vmax.f32 %v317, %v318
  %v320 = vrot.slane %v301, 4
  %v321 = vmax.f32 %v301, %v320
  %v322 = vrot.slane %v321, 2
  %v323 = vmax.f32 %v321, %v322
  %v324 = vrot.slane %v323, 1
  %v325 = vmax.f32 %v323, %v324
  %v326 = vrot.slane %v304, 4
  %v327 = vmax.f32 %v304, %v326
  %v328 = vrot.slane %v327, 2
  %v329 = vmax.f32 %v327, %v328
  %v330 = vrot.slane %v329, 1
  %v331 = vmax.f32 %v329, %v330
  %v332 = vrot.slane %v307, 4
  %v333 = vmax.f32 %v307, %v332
  %v334 = vrot.slane %v333, 2
  %v335 = vmax.f32 %v333, %v334
  %v336 = vrot.slane %v335, 1
  %v337 = vmax.f32 %v335, %v336
  %v338 = vrot.slane %v310, 4
  %v339 = vmax.f32 %v310, %v338
  %v340 = vrot.slane %v339, 2
  %v341 = vmax.f32 %v339, %v340
  %v342 = vrot.slane %v341, 1
  %v343 = vmax.f32 %v341, %v342
  %v344 = vrot.slane %v313, 4
  %v345 = vmax.f32 %v313, %v344
  %v346 = vrot.slane %v345, 2
  %v347 = vmax.f32 %v345, %v346
  %v348 = vrot.slane %v347, 1
  %v349 = vmax.f32 %v347, %v348
  %v350 = vsub.f32 %v298, %v319
  %v351 = vsub.f32 %v301, %v325
  %v352 = vsub.f32 %v304, %v331
  %v353 = vsub.f32 %v307, %v337
  %v354 = vsub.f32 %v310, %v343
  %v355 = vsub.f32 %v313, %v349
  %v356 = vmul.f32 %v350, 1.442695
  %v357 = vpow.pop %v356
  %v358 = vmul.f32 %v351, 1.442695
  %v359 = vpow.pop %v358
  %v360 = vmul.f32 %v352, 1.442695
  %v361 = vpow.pop %v360
  %v362 = vmul.f32 %v353, 1.442695
  %v363 = vpow.pop %v362
  %v364 = vmul.f32 %v354, 1.442695
  %v365 = vpow.pop %v364
  %v366 = vmul.f32 %v355, 1.442695
  %v367 = vpow.pop %v366
  %v368 = vrot.slane %v357, 4
  %v369 = vadd.f32 %v357, %v368
  %v370 = vrot.slane %v369, 2
  %v371 = vadd.f32 %v369, %v370
  %v372 = vrot.slane %v371, 1
  %v373 = vadd.f32 %v371, %v372
  %v374 = vrot.slane %v359, 4
  %v375 = vadd.f32 %v359, %v374
  %v376 = vrot.slane %v375, 2
  %v377 = vadd.f32 %v375, %v376
  %v378 = vrot.slane %v377, 1
  %v379 = vadd.f32 %v377, %v378
  %v380 = vrot.slane %v361, 4
  %v381 = vadd.f32 %v361, %v380
  %v382 = vrot.slane %v381, 2
  %v383 = vadd.f32 %v381, %v382
  %v384 = vrot.slane %v383, 1
  %v385 = vadd.f32 %v383, %v384
  %v386 = vrot.slane %v363, 4
  %v387 = vadd.f32 %v363, %v386
  %v388 = vrot.slane %v387, 2
  %v389 = vadd.f32 %v387, %v388
  %v390 = vrot.slane %v389, 1
  %v391 = vadd.f32 %v389, %v390
  %v392 = vrot.slane %v365, 4
  %v393 = vadd.f32 %v365, %v392
  %v394 = vrot.slane %v393, 2
  %v395 = vadd.f32 %v393, %v394
  %v396 = vrot.slane %v395, 1
  %v397 = vadd.f32 %v395, %v396
  %v398 = vrot.slane %v367, 4
  %v399 = vadd.f32 %v367, %v398
  %v400 = vrot.slane %v399, 2
  %v401 = vadd.f32 %v399, %v400
  %v402 = vrot.slane %v401, 1
  %v403 = vadd.f32 %v401, %v402
  %v404 = vrcp.pop %v373
  %v405 = vrcp.pop %v379
  %v406 = vrcp.pop %v385
  %v407 = vrcp.pop %v391
  %v408 = vrcp.pop %v397
  %v409 = vrcp.pop %v403
  %v410 = vmul.f32 %v357, %v404
  %v411 = vmul.f32 %v359, %v405
  %v412 = vmul.f32 %v361, %v406
  %v413 = vmul.f32 %v363, %v407
  %v414 = vmul.f32 %v365, %v408
  %v415 = vmul.f32 %v367, %v409
  %v416 = vmul.f32 %v410, %v17
  %v417 = vmul.f32 %v411, %v18
  %v418 = vmul.f32 %v412, %v19
  %v419 = vmul.f32 %v413, %v20
  %v420 = vmul.f32 %v414, %v21
  %v421 = vmul.f32 %v415, %v22
  %v422 = vsel %vm25, %v416, 0.0
  %v423 = vrot.slane %v422, 4
  %v424 = vadd.f32 %v422, %v423
  %v425 = vrot.slane %v424, 2
  %v426 = vadd.f32 %v424, %v425
  %v427 = vrot.slane %v426, 1
  %v428 = vadd.f32 %v426, %v427
  %v429 = vsel %vm25, %v417, 0.0
  %v430 = vrot.slane %v429, 4
  %v431 = vadd.f32 %v429, %v430
  %v432 = vrot.slane %v431, 2
  %v433 = vadd.f32 %v431, %v432
  %v434 = vrot.slane %v433, 1
  %v435 = vadd.f32 %v433, %v434
  %v436 = vsel %vm25, %v418, 0.0
  %v437 = vrot.slane %v436, 4
  %v438 = vadd.f32 %v436, %v437
  %v439 = vrot.slane %v438, 2
  %v440 = vadd.f32 %v438, %v439
  %v441 = vrot.slane %v440, 1
  %v442 = vadd.f32 %v440, %v441
  %v443 = vsel %vm25, %v419, 0.0
  %v444 = vrot.slane %v443, 4
  %v445 = vadd.f32 %v443, %v444
  %v446 = vrot.slane %v445, 2
  %v447 = vadd.f32 %v445, %v446
  %v448 = vrot.slane %v447, 1
  %v449 = vadd.f32 %v447, %v448
  %v450 = vsel %vm25, %v420, 0.0
  %v451 = vrot.slane %v450, 4
  %v452 = vadd.f32 %v450, %v451
  %v453 = vrot.slane %v452, 2
  %v454 = vadd.f32 %v452, %v453
  %v455 = vrot.slane %v454, 1
  %v456 = vadd.f32 %v454, %v455
  %v457 = vsel %vm25, %v421, 0.0
  %v458 = vrot.slane %v457, 4
  %v459 = vadd.f32 %v457, %v458
  %v460 = vrot.slane %v459, 2
  %v461 = vadd.f32 %v459, %v460
  %v462 = vrot.slane %v461, 1
  %v463 = vadd.f32 %v461, %v462
  %vm470 = vcmask 1041409
  %v471 = vsel %vm470, %v435, %v428
  %vm472 = vcmask 1042434
  %v473 = vsel %vm472, %v442, %v471
  %vm474 = vcmask 1043459
  %v475 = vsel %vm474, %v449, %v473
  %vm476 = vcmask 1044484
  %v477 = vsel %vm476, %v456, %v475
  %vm478 = vcmask 1045509
  %v479 = vsel %vm478, %v463, %v477
  %vm481 = vcmask 128000
  %482 = vst.msk [vmem:[%s4] sm:$0x3f] %vm481, %v479
  // Predicated region
  $region18: #{vn_attention_with_context2.1} parent=0 // pred_check
    _
  $region19: #{vn_attention_with_context2.1} parent=0 // pred_check_branch
    %484 = sbr.rel (0) target = $region21
  $region20: #{vn_attention_with_context2.1} parent=0 // pred_region
    _
  $region21: #{vn_attention_with_context2.1} parent=0 // pred_fallthru
    _
  // Predicated region
  $region22: #{vn_attention_with_context2.1} parent=0 // pred_check
    _
  $region23: #{vn_attention_with_context2.1} parent=0 // pred_check_branch
    %486 = sbr.rel (0) target = $region25
  $region24: #{vn_attention_with_context2.1} parent=0 // pred_region
    _
  $region25: #{vn_attention_with_context2.1} parent=0 // pred_fallthru
    _

</llo_original>
